<compile_context>
chip_gen: v7x
topology: tpu7x:2x2x1
jax: 0.10.0
libtpu: 0.0.40
codegen_flags: <defaults>
</compile_context>

<pallas_src>
import jax
import jax.numpy as jnp
from jax.experimental import pallas as pl
from jax.experimental.pallas import tpu as pltpu


# ----------------------------------------------------------------------------
# Kernels
# ----------------------------------------------------------------------------
def _importance_kernel(ht_ref, w_ref, b_ref, at_ref, out_ref):
    """img_cond=False path (transposed layout).

       out[0, i] = sum_f (A @ l1norm(relu(h @ W.T + b)))[i, f]
                 = sum_n A[i, n] * (l1_n / max(l1_n, eps))
       with l1_n = sum_f relu(W @ h.T + b)[f, n]."""
    zt = jnp.dot(w_ref[...], ht_ref[...],
                 preferred_element_type=jnp.float32)           # (F, N)
    zt = jnp.maximum(zt + b_ref[...], 0.0)                     # ReLU
    l1 = jnp.sum(zt, axis=0, keepdims=True)                    # (1, N); z >= 0, no abs
    s = l1 * pl.reciprocal(jnp.maximum(l1, 1e-12))             # rowsum of L1-normalized z
    out_ref[...] = jnp.dot(s, at_ref[...],
                           preferred_element_type=jnp.float32)  # (1, N) lane-dense


def _importance_img_kernel(h_ref, wt_ref, b_ref, a_ref, img_ref,
                           wimg_t_ref, bimg_ref, out_ref):
    """img_cond=True path.

       hs  = colsum(A) @ l1norm(relu(h @ W.T + b))                       (1, F)
       out = [hs | img_feat] @ W_img.T + b_img  (concat folded into a
             split matmul over one pre-transposed W_img operand)         (1, C)"""
    F = h_ref.shape[1]
    z = jnp.dot(h_ref[...], wt_ref[...],
                preferred_element_type=jnp.float32)             # (N, F)
    z = jnp.maximum(z + b_ref[...], 0.0)                        # ReLU
    l1 = jnp.sum(z, axis=1, keepdims=True)                      # (N, 1); no abs needed
    z_n = z * pl.reciprocal(jnp.maximum(l1, 1e-12))             # L1 row-normalize
    col_a = jnp.sum(a_ref[...], axis=0, keepdims=True)          # (1, N) column sums of A
    hs = jnp.dot(col_a, z_n,
                 preferred_element_type=jnp.float32)            # (1, F) == sum(A@z_n, 0)
    out = (jnp.dot(hs, wimg_t_ref[:F, :],
                   preferred_element_type=jnp.float32)
           + jnp.dot(img_ref[...], wimg_t_ref[F:, :],
                     preferred_element_type=jnp.float32)
           + bimg_ref[...])
    out_ref[...] = out


# ----------------------------------------------------------------------------
# Wrapper
# ----------------------------------------------------------------------------
def _vmem_spec():
    return pl.BlockSpec(memory_space=pltpu.MemorySpace.VMEM)


def importance_net_forward(h, A, w, b,
                           img_feat=None, w_img=None, b_img=None,
                           img_cond=False):
    """JAX/Pallas equivalent of Importance_net.forward."""
    N, F = h.shape
    h = jnp.asarray(h, jnp.float32)
    A = jnp.asarray(A, jnp.float32)
    w = jnp.asarray(w, jnp.float32)        # PyTorch layout: (out_features, in_features)
    b = jnp.asarray(b, jnp.float32)

    if not img_cond:
        out = pl.pallas_call(
            _importance_kernel,
            out_shape=jax.ShapeDtypeStruct((1, N), jnp.float32),
            in_specs=[_vmem_spec()] * 4,
            out_specs=_vmem_spec(),
        )(h.T, w, b.reshape(F, 1), A.T)     # transposed layout (layout plumbing)
        return out[0]                       # (N,)  == torch.sum(A @ z_norm, 1)

    # img_cond=True
    C = w_img.shape[0]
    out = pl.pallas_call(
        _importance_img_kernel,
        out_shape=jax.ShapeDtypeStruct((1, C), jnp.float32),
        in_specs=[_vmem_spec()] * 7,
        out_specs=_vmem_spec(),
    )(h, w.T, b.reshape(1, F), A,
      jnp.asarray(img_feat, jnp.float32),
      jnp.asarray(w_img, jnp.float32).T,    # single (F + input_dim, C) operand
      jnp.asarray(b_img, jnp.float32).reshape(1, C))
    return out                              # (1, C)


# ----------------------------------------------------------------------------
# Pure-JAX reference (mirrors the PyTorch forward exactly)
# ----------------------------------------------------------------------------
def reference_forward(h, A, w, b, img_feat=None, w_img=None, b_img=None,
                      img_cond=False):
    z = h @ w.T + b
    z = jnp.maximum(z, 0.0)
    l1 = jnp.sum(jnp.abs(z), axis=1, keepdims=True)
    z = z / jnp.maximum(l1, 1e-12)
    m = A @ z
    if img_cond:
        hs = jnp.sum(m, axis=0)
        cat = jnp.concatenate([hs[None, :], img_feat], axis=1)
        return cat @ w_img.T + b_img
    return jnp.sum(m, axis=1)


# ----------------------------------------------------------------------------
# Main
# ----------------------------------------------------------------------------
if __name__ == "__main__":
    key = jax.random.PRNGKey(0)

    N = 8            # number of graph nodes
    F = 32           # feature_dim
    INPUT_DIM = 24   # img_feat dim (module default is 100; small synthetic size)
    NUM_CLASSES = 8  # num_classes (module default is 10; small synthetic size)

    keys = jax.random.split(key, 8)
    h = jax.random.normal(keys[0], (N, F), jnp.float32)
    A = jax.random.normal(keys[1], (N, N), jnp.float32)
    img_feat = jax.random.normal(keys[2], (1, INPUT_DIM), jnp.float32)

    # Deterministic parameter init (shapes follow nn.Linear: weight (out, in))
    w = jax.random.normal(keys[3], (F, F), jnp.float32) * 0.1
    b = jax.random.normal(keys[4], (F,), jnp.float32) * 0.1
    w_img = jax.random.normal(keys[5], (NUM_CLASSES, F + INPUT_DIM), jnp.float32) * 0.1
    b_img = jax.random.normal(keys[6], (NUM_CLASSES,), jnp.float32) * 0.1

    # --- img_cond = False (default path) ---
    out0 = jax.block_until_ready(importance_net_forward(h, A, w, b, img_cond=False))
    ref0 = reference_forward(h, A, w, b, img_cond=False)
    assert out0.shape == (N,)
    assert jnp.allclose(out0, ref0, atol=1e-4, rtol=1e-4), "img_cond=False mismatch"

    # --- img_cond = True path ---
    out1 = jax.block_until_ready(
        importance_net_forward(h, A, w, b, img_feat, w_img, b_img, img_cond=True))
    ref1 = reference_forward(h, A, w, b, img_feat, w_img, b_img, img_cond=True)
    assert out1.shape == (1, NUM_CLASSES)
    assert jnp.allclose(out1, ref1, atol=1e-4, rtol=1e-4), "img_cond=True mismatch"

    print("KERNEL_OK")
</pallas_src>

<mosaic_0001>
module attributes {stable_mosaic.version = 11 : i64} {
  func.func @_importance_kernel(%arg0: memref<32x8xf32, #tpu.memory_space<vmem>>, %arg1: memref<32x32xf32, #tpu.memory_space<vmem>>, %arg2: memref<32x1xf32, #tpu.memory_space<vmem>>, %arg3: memref<8x8xf32, #tpu.memory_space<vmem>>, %arg4: memref<1x8xf32, #tpu.memory_space<vmem>>) attributes {dimension_semantics = [], scalar_prefetch = 0 : i64, scratch_operands = 0 : i64, tpu.core_type = #tpu.core_type<tc>} {
    %c0 = arith.constant 0 : index
    %c0_0 = arith.constant 0 : index
    %0 = vector.load %arg1[%c0, %c0_0] : memref<32x32xf32, #tpu.memory_space<vmem>>, vector<32x32xf32>
    %c0_1 = arith.constant 0 : index
    %c0_2 = arith.constant 0 : index
    %1 = vector.load %arg0[%c0_1, %c0_2] : memref<32x8xf32, #tpu.memory_space<vmem>>, vector<32x8xf32>
    %cst = arith.constant dense<0.000000e+00> : vector<32x8xf32>
    %2 = tpu.matmul %0, %1, %cst {dimension_numbers = #tpu.dot_dimension_numbers<[1], [0], [0], [1], [0, 0, 1, 1], [], []>} : vector<32x32xf32>, vector<32x8xf32>, vector<32x8xf32> -> vector<32x8xf32>
    %c0_3 = arith.constant 0 : index
    %c0_4 = arith.constant 0 : index
    %3 = vector.load %arg2[%c0_3, %c0_4] : memref<32x1xf32, #tpu.memory_space<vmem>>, vector<32x1xf32>
    %4 = vector.broadcast %3 : vector<32x1xf32> to vector<32x8xf32>
    %5 = arith.addf %2, %4 : vector<32x8xf32>
    %cst_5 = arith.constant 0.000000e+00 : f32
    %6 = vector.broadcast %cst_5 : f32 to vector<32x8xf32>
    %7 = arith.maximumf %5, %6 : vector<32x8xf32>
    %cst_6 = arith.constant dense<0.000000e+00> : vector<8xf32>
    %8 = vector.multi_reduction <add>, %7, %cst_6 [0] : vector<32x8xf32> to vector<8xf32>
    %9 = vector.shape_cast %8 : vector<8xf32> to vector<1x8xf32>
    %cst_7 = arith.constant 9.99999996E-13 : f32
    %10 = vector.broadcast %cst_7 : f32 to vector<1x8xf32>
    %11 = arith.maximumf %9, %10 : vector<1x8xf32>
    %12 = tpu.reciprocal %11 : vector<1x8xf32> -> vector<1x8xf32>
    %13 = arith.mulf %9, %12 : vector<1x8xf32>
    %c0_8 = arith.constant 0 : index
    %c0_9 = arith.constant 0 : index
    %14 = vector.load %arg3[%c0_8, %c0_9] : memref<8x8xf32, #tpu.memory_space<vmem>>, vector<8x8xf32>
    %cst_10 = arith.constant dense<0.000000e+00> : vector<1x8xf32>
    %15 = tpu.matmul %13, %14, %cst_10 {dimension_numbers = #tpu.dot_dimension_numbers<[1], [0], [0], [1], [0, 0, 1, 1], [], []>} : vector<1x8xf32>, vector<8x8xf32>, vector<1x8xf32> -> vector<1x8xf32>
    %c0_11 = arith.constant 0 : index
    %c0_12 = arith.constant 0 : index
    %16 = vector.load %arg4[%c0_11, %c0_12] : memref<1x8xf32, #tpu.memory_space<vmem>>, vector<1x8xf32>
    tpu.vector_store %arg4[%c0_11, %c0_12], %15 {strides = array<i32>} : memref<1x8xf32, #tpu.memory_space<vmem>>, vector<1x8xf32>,
    return
  }
}

</mosaic_0001>

<llo_original>
// kernel: tpu_custom_call.1
$region0: #{tpu_custom_call.1}
  #allocation0 [shape = 'u32[]', space=smem, size = 0x4, offset = 0x4, fixed_abs, tag = 'smem constant byte address 0x4 - core index']
  #allocation1 [shape = 'u32[144,128]{1,0:T(1,128)}', space=vmem, size = 0x12000, scoped, tag = 'internal scratch']
  %s0 = inlined_call_operand.vmem [shape: f32[32,8], index: 0, kind: input, shape index: {}]
  %s1 = inlined_call_operand.vmem [shape: f32[32,32], index: 1, kind: input, shape index: {}]
  %s2 = inlined_call_operand.vmem [shape: f32[32,1], index: 2, kind: input, shape index: {}]
  %s3 = inlined_call_operand.vmem [shape: f32[8,8], index: 3, kind: input, shape index: {}]
  %s4 = inlined_call_operand.hbm [shape: f32[1,8], index: 4, kind: output, shape index: {}]
  %s5 = sld [smem:[#allocation0]]
  $region26: #{tpu_custom_call.1} parent=0
    _
  %s7 = ssub.s32 1, %s5
  %s8 = scalar_select 0, %s7, %s5
  $region1: #{tpu_custom_call.1} parent=0
    #allocation2 [shape = 'u8[512]{0}', space=vmem, size = 0x400, scoped, tag = 'output window, operand 0, single buffered']
    #allocation3 [shape = 's32[1]{0}', space=sflag, size = 0x4, scoped, tag = 'scoped memory for tpu_custom_call.1']
    %9 = vsyncpa [#allocation3], 0
    // Predicated region
    $region2: #{tpu_custom_call.1} parent=1 // pred_check
      _
    $region3: #{tpu_custom_call.1} parent=1 // pred_check_branch
      %11 = sbr.rel (0) target = $region5
    $region4: #{tpu_custom_call.1} parent=1 // pred_region
      _
    $region5: #{tpu_custom_call.1} parent=1 // pred_fallthru
      _
    // Predicated region
    $region6: #{tpu_custom_call.1} parent=1 // pred_check
      _
    $region7: #{tpu_custom_call.1} parent=1 // pred_check_branch
      %13 = sbr.rel (0) target = $region9
    $region8: #{tpu_custom_call.1} parent=1 // pred_region
      _
    $region9: #{tpu_custom_call.1} parent=1 // pred_fallthru
      _
    // Predicated region
    $region10: #{tpu_custom_call.1} parent=1 // pred_check
      _
    $region11: #{tpu_custom_call.1} parent=1 // pred_check_branch
      %15 = sbr.rel (0) target = $region13
    $region12: #{tpu_custom_call.1} parent=1 // pred_region
      _
    $region13: #{tpu_custom_call.1} parent=1 // pred_fallthru
      _
    // Predicated region
    $region14: #{tpu_custom_call.1} parent=1 // pred_check
      _
    $region15: #{tpu_custom_call.1} parent=1 // pred_check_branch
      %17 = sbr.rel (0) target = $region17
    $region16: #{tpu_custom_call.1} parent=1 // pred_region
      _
    $region17: #{tpu_custom_call.1} parent=1 // pred_fallthru
      _
    %v18 = vld [vmem:[%s1] sm:$0xff]
    %v19 = vld [vmem:[%s1 + $0x8] sm:$0xff]
    %v20 = vld [vmem:[%s1 + $0x10] sm:$0xff]
    %v21 = vld [vmem:[%s1 + $0x18] sm:$0xff]
    %v22 = vld [vmem:[%s0] sm:$0xff]
    %v23 = vld [vmem:[%s0 + $0x8] sm:$0xff]
    %v24 = vld [vmem:[%s0 + $0x10] sm:$0xff]
    %v25 = vld [vmem:[%s0 + $0x18] sm:$0xff]
    %v26 = vld [vmem:[%s2] sm:$0xff]
    %v27 = vld [vmem:[%s2 + $0x8] sm:$0xff]
    %v28 = vld [vmem:[%s2 + $0x10] sm:$0xff]
    %v29 = vld [vmem:[%s2 + $0x18] sm:$0xff]
    %31 = vset.pattern.permute.xlu0 0
    %32 = vperm.xlu0 %31, %v26
    %v33 = vpop.permute.xlu0 %32
    %36 = vset.pattern.permute.xlu0 0
    %37 = vperm.xlu0 %36, %v27
    %v38 = vpop.permute.xlu0 %37
    %41 = vset.pattern.permute.xlu0 0
    %42 = vperm.xlu0 %41, %v28
    %v43 = vpop.permute.xlu0 %42
    %46 = vset.pattern.permute.xlu0 0
    %47 = vperm.xlu0 %46, %v29
    %v48 = vpop.permute.xlu0 %47
    %vm50 = vcmask 261120
    %v52 = vsel %vm50, %v18, 0
    %v55 = vsel %vm50, %v19, 0
    %v58 = vsel %vm50, %v20, 0
    %v61 = vsel %vm50, %v21, 0
    %63 = vmatprep.subr.mxu0 0.0
    %64 = vmatpush1.msra.mxu0 %v22
    %65 = vmatprep.subr.mxu0 0.0
    %66 = vmatpush1.msra.mxu0 %v23
    %67 = vmatprep.subr.mxu0 0.0
    %68 = vmatpush1.msra.mxu0 %v24
    %69 = vmatprep.subr.mxu0 0.0
    %70 = vmatpush1.msra.mxu0 %v25
    %71 = vmatprep.subr.mxu0 0.0
    %72 = vmatpush1.msra.mxu0 0.0
    %73 = vmatprep.subr.mxu0 0.0
    %74 = vmatpush1.msra.mxu0 0.0
    %75 = vmatprep.subr.mxu0 0.0
    %76 = vmatpush1.msra.mxu0 0.0
    %77 = vmatprep.subr.mxu0 0.0
    %78 = vmatpush1.msra.mxu0 0.0
    %79 = vmatprep.subr.mxu0 0.0
    %80 = vmatpush1.msra.mxu0 0.0
    %81 = vmatprep.subr.mxu0 0.0
    %82 = vmatpush1.msra.mxu0 0.0
    %83 = vmatprep.subr.mxu0 0.0
    %84 = vmatpush1.msra.mxu0 0.0
    %85 = vmatprep.subr.mxu0 0.0
    %86 = vmatpush1.msra.mxu0 0.0
    %87 = vmatprep.subr.mxu0 0.0
    %88 = vmatpush1.msra.mxu0 0.0
    %89 = vmatprep.subr.mxu0 0.0
    %90 = vmatpush1.msra.mxu0 0.0
    %91 = vmatprep.subr.mxu0 0.0
    %92 = vmatpush1.msra.mxu0 0.0
    %93 = vmatprep.subr.mxu0 0.0
    %94 = vmatpush1.msra.mxu0 0.0
    %95 = vmatprep.subr.mxu0 0.0
    %96 = vmatpush1.msra.mxu0 0.0
    %97 = vmatprep.subr.mxu0 0.0
    %98 = vmatpush1.msra.mxu0 0.0
    %99 = vmatprep.subr.mxu0 0.0
    %100 = vmatpush1.msra.mxu0 0.0
    %101 = vmatprep.subr.mxu0 0.0
    %102 = vmatpush1.msra.mxu0 0.0
    %103 = vmatprep.subr.mxu0 0.0
    %104 = vmatpush1.msra.mxu0 0.0
    %105 = vmatprep.subr.mxu0 0.0
    %106 = vmatpush1.msra.mxu0 0.0
    %107 = vmatprep.subr.mxu0 0.0
    %108 = vmatpush1.msra.mxu0 0.0
    %109 = vmatprep.subr.mxu0 0.0
    %110 = vmatpush1.msra.mxu0 0.0
    %111 = vmatprep.subr.mxu0 0.0
    %112 = vmatpush1.msra.mxu0 0.0
    %113 = vmatprep.subr.mxu0 0.0
    %114 = vmatpush1.msra.mxu0 0.0
    %115 = vmatprep.subr.mxu0 0.0
    %116 = vmatpush1.msra.mxu0 0.0
    %117 = vmatprep.subr.mxu0 0.0
    %118 = vmatpush1.msra.mxu0 0.0
    %119 = vmatprep.subr.mxu0 0.0
    %120 = vmatpush1.msra.mxu0 0.0
    %121 = vmatprep.subr.mxu0 0.0
    %122 = vmatpush1.msra.mxu0 0.0
    %123 = vmatprep.subr.mxu0 0.0
    %124 = vmatpush1.msra.mxu0 0.0
    %125 = vmatprep.subr.mxu0 0.0
    %126 = vmatpush1.msra.mxu0 0.0
    %127 = vmatprep.mubr.f32.mxu0 0.0
    %128 = vmatmul.mubr.f32.gmra.mrb[0].mxu0 %v52
    %v129 = vpop.f32.mrb[0].mxu0
    %v130 = vadd.f32 %v33, %v129
    %v131 = vpop.f32.mrb[0].mxu0
    %132 = vmatprep.mubr.f32.mxu0 0.0
    %133 = vmatmul.mubr.f32.gmra.mrb[0].mxu0 %v55
    %v134 = vpop.f32.mrb[0].mxu0
    %v135 = vadd.f32 %v38, %v134
    %v136 = vpop.f32.mrb[0].mxu0
    %137 = vmatprep.mubr.f32.mxu0 0.0
    %138 = vmatmul.mubr.f32.gmra.mrb[0].mxu0 %v58
    %v139 = vpop.f32.mrb[0].mxu0
    %v140 = vadd.f32 %v43, %v139
    %v141 = vpop.f32.mrb[0].mxu0
    %142 = vmatprep.mubr.f32.mxu0 0.0
    %143 = vmatmul.mubr.f32.gmra.mrb[0].mxu0 %v61
    %v144 = vpop.f32.mrb[0].mxu0
    %v145 = vadd.f32 %v48, %v144
    %v146 = vpop.f32.mrb[0].mxu0
    %147 = vdwg.mxu0
    %v148 = vmax.f32 %v130, 0.0
    %v149 = vmax.f32 %v135, 0.0
    %v150 = vmax.f32 %v140, 0.0
    %v151 = vmax.f32 %v145, 0.0
    %vm152 = vcmask 64512
    %v153 = vsel %vm152, %v148, 0.0
    %v154 = vsel %vm152, %v149, 0.0
    %v155 = vadd.f32 %v153, %v154
    %v156 = vsel %vm152, %v150, 0.0
    %v157 = vadd.f32 %v155, %v156
    %v158 = vsel %vm152, %v151, 0.0
    %v159 = vadd.f32 %v157, %v158
    %v160 = vrot.slane %v159, 4
    %v161 = vadd.f32 %v159, %v160
    %v162 = vrot.slane %v161, 2
    %v163 = vadd.f32 %v161, %v162
    %v164 = vrot.slane %v163, 1
    %v165 = vadd.f32 %v163, %v164
    %v166 = vmax.f32 %v165, 1e-12
    %v167 = vrcp.pop %v166
    %v168 = vmul.f32 %v165, %v167
    %v169 = vld [vmem:[%s3] sm:$0xff]
    %v171 = vsel %vm152, %v168, 0
    %173 = vmatprep.subr.mxu0 0.0
    %174 = vmatpush1.msra.mxu0 %v169
    %175 = vmatprep.subr.mxu0 0.0
    %176 = vmatpush1.msra.mxu0 0.0
    %177 = vmatprep.subr.mxu0 0.0
    %178 = vmatpush1.msra.mxu0 0.0
    %179 = vmatprep.subr.mxu0 0.0
    %180 = vmatpush1.msra.mxu0 0.0
    %181 = vmatprep.subr.mxu0 0.0
    %182 = vmatpush1.msra.mxu0 0.0
    %183 = vmatprep.subr.mxu0 0.0
    %184 = vmatpush1.msra.mxu0 0.0
    %185 = vmatprep.subr.mxu0 0.0
    %186 = vmatpush1.msra.mxu0 0.0
    %187 = vmatprep.subr.mxu0 0.0
    %188 = vmatpush1.msra.mxu0 0.0
    %189 = vmatprep.subr.mxu0 0.0
    %190 = vmatpush1.msra.mxu0 0.0
    %191 = vmatprep.subr.mxu0 0.0
    %192 = vmatpush1.msra.mxu0 0.0
    %193 = vmatprep.subr.mxu0 0.0
    %194 = vmatpush1.msra.mxu0 0.0
    %195 = vmatprep.subr.mxu0 0.0
    %196 = vmatpush1.msra.mxu0 0.0
    %197 = vmatprep.subr.mxu0 0.0
    %198 = vmatpush1.msra.mxu0 0.0
    %199 = vmatprep.subr.mxu0 0.0
    %200 = vmatpush1.msra.mxu0 0.0
    %201 = vmatprep.subr.mxu0 0.0
    %202 = vmatpush1.msra.mxu0 0.0
    %203 = vmatprep.subr.mxu0 0.0
    %204 = vmatpush1.msra.mxu0 0.0
    %205 = vmatprep.subr.mxu0 0.0
    %206 = vmatpush1.msra.mxu0 0.0
    %207 = vmatprep.subr.mxu0 0.0
    %208 = vmatpush1.msra.mxu0 0.0
    %209 = vmatprep.subr.mxu0 0.0
    %210 = vmatpush1.msra.mxu0 0.0
    %211 = vmatprep.subr.mxu0 0.0
    %212 = vmatpush1.msra.mxu0 0.0
    %213 = vmatprep.subr.mxu0 0.0
    %214 = vmatpush1.msra.mxu0 0.0
    %215 = vmatprep.subr.mxu0 0.0
    %216 = vmatpush1.msra.mxu0 0.0
    %217 = vmatprep.subr.mxu0 0.0
    %218 = vmatpush1.msra.mxu0 0.0
    %219 = vmatprep.subr.mxu0 0.0
    %220 = vmatpush1.msra.mxu0 0.0
    %221 = vmatprep.subr.mxu0 0.0
    %222 = vmatpush1.msra.mxu0 0.0
    %223 = vmatprep.subr.mxu0 0.0
    %224 = vmatpush1.msra.mxu0 0.0
    %225 = vmatprep.subr.mxu0 0.0
    %226 = vmatpush1.msra.mxu0 0.0
    %227 = vmatprep.subr.mxu0 0.0
    %228 = vmatpush1.msra.mxu0 0.0
    %229 = vmatprep.subr.mxu0 0.0
    %230 = vmatpush1.msra.mxu0 0.0
    %231 = vmatprep.subr.mxu0 0.0
    %232 = vmatpush1.msra.mxu0 0.0
    %233 = vmatprep.subr.mxu0 0.0
    %234 = vmatpush1.msra.mxu0 0.0
    %235 = vmatprep.subr.mxu0 0.0
    %236 = vmatpush1.msra.mxu0 0.0
    %237 = vmatprep.mubr.f32.mxu0 0.0
    %238 = vmatmul.mubr.f32.gmra.mrb[0].mxu0 %v171
    %v239 = vpop.f32.mrb[0].mxu0
    %v240 = vadd.f32 0.0, %v239
    %v241 = vpop.f32.mrb[0].mxu0
    %242 = vdwg.mxu0
    %vm243 = vcmask 57344
    %244 = vst.msk [vmem:[#allocation2] sm:$0x1] %vm243, %v240
    // Predicated region
    $region18: #{tpu_custom_call.1} parent=1 // pred_check
      _
    $region19: #{tpu_custom_call.1} parent=1 // pred_check_branch
      %246 = sbr.rel (0) target = $region21
    $region20: #{tpu_custom_call.1} parent=1 // pred_region
      %s248 = ssub.s32 16, 16
      %249 = vsyncadd [#allocation3], %s248
      %s251 = sshll.u32 [#allocation2], 4
      %s252 = int_to_ptr.vmem [resolvable:$true] %s251
      %254 = dma.vmem_to_hbm [thread:$0]  %s252, 16, %s4, [#allocation3]
    $region21: #{tpu_custom_call.1} parent=1 // pred_fallthru
      _
    // Predicated region
    $region22: #{tpu_custom_call.1} parent=1 // pred_check
      _
    $region23: #{tpu_custom_call.1} parent=1 // pred_check_branch
      %256 = sbr.rel (0) target = $region25
    $region24: #{tpu_custom_call.1} parent=1 // pred_region
      %257 = dma.done [#allocation3], 16
    $region25: #{tpu_custom_call.1} parent=1 // pred_fallthru
      _
    %258 = vsyncpa [#allocation3], 1

</llo_original>
